<compile_context>
chip_gen: v7x
topology: tpu7x:2x2x1
jax: 0.10.0
libtpu: 0.0.40
codegen_flags: <defaults>
</compile_context>

<pallas_src>
import functools

import jax
import jax.numpy as jnp
from jax import lax
from jax.experimental import pallas as pl
from jax.experimental.pallas import tpu as pltpu


_LANE = 128
_ROW_ALIGN = 32                         # sublane-safe for f32 / bf16 / int8 tiles
_UNROLL = 8
_MAX_IDX_PER_CALL = 65536               # i32[N] SMEM prefetch pads to next_pow2(4N) B
_VMEM_TABLE_BYTES = 8 * 1024 * 1024     # fast-path threshold (fits every generation)
_VMEM_BUDGET = 24 * 1024 * 1024         # soft cap for table + buffers + out tiles
_VMEM_LIMIT = 32 * 1024 * 1024          # scoped-VMEM limit, safe on v5e/v6e/v7x


def _round_up(x, m):
    return (x + m - 1) // m * m


def _cdiv(a, b):
    return -(-a // b)


# --------------------------------------------------------------------------
# Kernels
# --------------------------------------------------------------------------
def _vmem_gather_kernel(idx_ref, w_ref, out_ref, buf):
    # idx_ref : SMEM int32[n_pad]          (scalar-prefetched flat indices)
    # w_ref   : VMEM w_dtype[num_emb, D]   (whole table, fetched once)
    # out_ref : VMEM out_dtype[block, D]   (one output tile)
    # buf     : VMEM w_dtype[block, D]     (gather landing buffer)
    i = pl.program_id(0)
    block = buf.shape[0]

    def gather8(j8, carry):
        base = pl.multiple_of(j8 * _UNROLL, _UNROLL)
        for u in range(_UNROLL):                       # unrolled x8
            row = idx_ref[i * block + base + u]
            buf[pl.ds(base + u, 1), :] = w_ref[pl.ds(row, 1), :]
        return carry

    lax.fori_loop(0, block // _UNROLL, gather8, 0)
    # One whole-tile cast + one unmasked lane-dense store (D % 128 == 0).
    out_ref[...] = buf[...].astype(out_ref.dtype)


def _hbm_gather_kernel(idx_ref, w_hbm, out_ref, buf, sem):
    # idx_ref : SMEM int32[n_pad]              (scalar-prefetched flat indices)
    # w_hbm   : HBM  w_dtype[num_emb, D]       (full table, never copied wholesale)
    # out_ref : VMEM out_dtype[block, D]
    # buf     : VMEM w_dtype[block, D]         (DMA landing buffer)
    # sem     : DMA semaphore shared by all row copies of this grid step
    i = pl.program_id(0)
    block = buf.shape[0]

    # Issue every row DMA before waiting on any so the small latency-bound
    # copies overlap inside the DMA engine.  All SMEM scalar index reads
    # happen here, before any .wait().
    def issue8(j8, carry):
        base = pl.multiple_of(j8 * _UNROLL, _UNROLL)
        for u in range(_UNROLL):                       # unrolled x8
            row = idx_ref[i * block + base + u]
            pltpu.make_async_copy(
                w_hbm.at[pl.ds(row, 1), :],
                buf.at[pl.ds(base + u, 1), :],
                sem,
            ).start()
        return carry

    lax.fori_loop(0, block // _UNROLL, issue8, 0)

    # One matching decrement per row copy (all copies have identical shape,
    # so the dummy source slice yields the correct semaphore amount).
    def wait8(j8, carry):
        base = pl.multiple_of(j8 * _UNROLL, _UNROLL)
        for u in range(_UNROLL):                       # unrolled x8
            pltpu.make_async_copy(
                w_hbm.at[pl.ds(0, 1), :],
                buf.at[pl.ds(base + u, 1), :],
                sem,
            ).wait()
        return carry

    lax.fori_loop(0, block // _UNROLL, wait8, 0)

    out_ref[...] = buf[...].astype(out_ref.dtype)


# --------------------------------------------------------------------------
# Wrapper
# --------------------------------------------------------------------------
def _gather_chunk(weight, flat_idx, dtype, force_hbm):
    """weight[flat_idx] -> (n, D) in `dtype` with one pallas_call."""
    num_emb, d = weight.shape
    n = flat_idx.shape[0]
    w_row_bytes = d * jnp.dtype(weight.dtype).itemsize
    o_row_bytes = d * jnp.dtype(dtype).itemsize

    table_bytes = _round_up(num_emb, 8) * w_row_bytes
    use_vmem_table = (table_bytes <= _VMEM_TABLE_BYTES) and not force_hbm

    # Byte-based block sizing: landing buf + double-buffered out tile per row
    # (+ the table itself on the fast path), capped at 2048 rows per step.
    per_row = w_row_bytes + 2 * o_row_bytes
    budget = _VMEM_BUDGET - table_bytes if use_vmem_table else _VMEM_BUDGET // 2
    budget = max(budget, 2 * 1024 * 1024)
    max_block = min(2048, max(_ROW_ALIGN, (budget // per_row) // _ROW_ALIGN * _ROW_ALIGN))

    num_steps = max(1, _cdiv(n, max_block))
    # Keep >= 2 grid steps whenever n allows so a v7x megacore can split the
    # (issue-bound) grid across both TensorCores.
    if num_steps == 1 and n >= 2 * _ROW_ALIGN:
        num_steps = 2
    block = _round_up(_cdiv(n, num_steps), _ROW_ALIGN)
    n_pad = num_steps * block
    if n_pad != n:
        flat_idx = jnp.pad(flat_idx, (0, n_pad - n))   # padded rows gather row 0

    compiler_params = pltpu.CompilerParams(
        dimension_semantics=("parallel",),             # disjoint output tiles
        vmem_limit_bytes=_VMEM_LIMIT,
    )

    if use_vmem_table:
        kernel = _vmem_gather_kernel
        grid_spec = pltpu.PrefetchScalarGridSpec(
            num_scalar_prefetch=1,
            grid=(num_steps,),
            in_specs=[pl.BlockSpec((num_emb, d), lambda i, idx: (0, 0))],
            out_specs=pl.BlockSpec((block, d), lambda i, idx: (i, 0)),
            scratch_shapes=[pltpu.VMEM((block, d), weight.dtype)],
        )
    else:
        kernel = _hbm_gather_kernel
        grid_spec = pltpu.PrefetchScalarGridSpec(
            num_scalar_prefetch=1,
            grid=(num_steps,),
            in_specs=[pl.BlockSpec(memory_space=pl.ANY)],  # table stays in HBM
            out_specs=pl.BlockSpec((block, d), lambda i, idx: (i, 0)),
            scratch_shapes=[
                pltpu.VMEM((block, d), weight.dtype),
                pltpu.SemaphoreType.DMA(()),
            ],
        )

    out = pl.pallas_call(
        kernel,
        out_shape=jax.ShapeDtypeStruct((n_pad, d), dtype),
        grid_spec=grid_spec,
        compiler_params=compiler_params,
    )(flat_idx, weight)

    return out if n_pad == n else out[:n]


@functools.partial(jax.jit, static_argnames=("dtype", "force_hbm"))
def sparse_embedding_forward(weight, indices, dtype=jnp.float32, force_hbm=False):
    """Equivalent of SparseEmbedding.forward(indices, dtype)."""
    num_emb, d = weight.shape
    flat_idx = indices.reshape(-1).astype(jnp.int32)
    n = flat_idx.shape[0]
    if n == 0:
        return jnp.zeros(indices.shape + (d,), dtype=dtype)

    # PyTorch would raise on out-of-range ids; inside jit we clamp instead.
    flat_idx = jnp.clip(flat_idx, 0, num_emb - 1)

    # Lane-align the embedding dim so row DMAs are aligned and the tile store
    # is a lane-dense unmasked vst.
    d_pad = _round_up(d, _LANE)
    w = weight if d_pad == d else jnp.pad(weight, ((0, 0), (0, d_pad - d)))

    # Chunk lookups so the 1-D i32 SMEM prefetch never overflows.
    outs = []
    for start in range(0, n, _MAX_IDX_PER_CALL):
        stop = min(start + _MAX_IDX_PER_CALL, n)
        outs.append(_gather_chunk(w, flat_idx[start:stop], dtype, force_hbm))
    out = outs[0] if len(outs) == 1 else jnp.concatenate(outs, axis=0)

    if d_pad != d:
        out = out[:, :d]
    return out.reshape(indices.shape + (d,))


def init_sparse_embedding(key, num_embeddings, embedding_dim, std=0.01):
    """Deterministic init matching nn.init.normal_(weight, std=std)."""
    # TODO(synk): apply_gradients (sparse AdamW update on CPU-pinned exp_avgs /
    # exp_avg_sqs) is optimizer-side, not part of the forward pass; not implemented.
    return std * jax.random.normal(
        key, (num_embeddings, embedding_dim), dtype=jnp.float32
    )


if __name__ == "__main__":
    key = jax.random.PRNGKey(0)
    k_w, k_idx1, k_idx2 = jax.random.split(key, 3)

    num_embeddings = 64
    embedding_dim = 128

    weight = init_sparse_embedding(k_w, num_embeddings, embedding_dim, std=0.01)

    def reference(w, idx, dtype):
        return w[idx.reshape(-1)].astype(dtype).reshape(idx.shape + (w.shape[1],))

    # Case 1: (2, 8) lookups, f32 output (VMEM-resident-table fast path).
    idx1 = jax.random.randint(
        k_idx1, (2, 8), minval=0, maxval=num_embeddings, dtype=jnp.int32
    )
    out1 = jax.block_until_ready(
        sparse_embedding_forward(weight, idx1, dtype=jnp.float32)
    )
    assert out1.shape == idx1.shape + (embedding_dim,)
    assert out1.dtype == jnp.float32
    assert jnp.allclose(out1, reference(weight, idx1, jnp.float32)), "case 1 mismatch"

    # Case 2: (4, 75) = 300 lookups, bf16 output, 2 grid steps + ragged tail.
    idx2 = jax.random.randint(
        k_idx2, (4, 75), minval=0, maxval=num_embeddings, dtype=jnp.int32
    )
    out2 = jax.block_until_ready(
        sparse_embedding_forward(weight, idx2, dtype=jnp.bfloat16)
    )
    assert out2.shape == idx2.shape + (embedding_dim,)
    assert out2.dtype == jnp.bfloat16
    assert jnp.allclose(
        out2.astype(jnp.float32),
        reference(weight, idx2, jnp.bfloat16).astype(jnp.float32),
    ), "case 2 mismatch"

    # Case 3: same small inputs but forced through the HBM per-row-DMA path
    # (the path used for tables too large for VMEM).
    out3 = jax.block_until_ready(
        sparse_embedding_forward(weight, idx1, dtype=jnp.float32, force_hbm=True)
    )
    assert jnp.allclose(out3, reference(weight, idx1, jnp.float32)), "case 3 mismatch"

    print("KERNEL_OK")
</pallas_src>

<mosaic_0001>
module attributes {stable_mosaic.version = 11 : i64} {
  func.func @_vmem_gather_kernel(%arg0: i32, %arg1: memref<32xi32, #tpu.memory_space<smem>>, %arg2: memref<64x128xf32, #tpu.memory_space<vmem>>, %arg3: memref<32x128xf32, #tpu.memory_space<vmem>>, %arg4: memref<32x128xf32, #tpu.memory_space<vmem>>) attributes {dimension_semantics = [#tpu.dimension_semantics<parallel>], iteration_bounds = array<i64: 1>, scalar_prefetch = 1 : i64, scratch_operands = 1 : i64, tpu.core_type = #tpu.core_type<tc>, window_params = [{pipeline_mode = #tpu.pipeline_mode<synchronous>, transform_indices = @transform_0, window_bounds = array<i64: 64, 128>}, {transform_indices = @transform_1, window_bounds = array<i64: 32, 128>}]} {
    %c0_i32 = arith.constant 0 : i32
    %c4_i32 = arith.constant 4 : i32
    %0 = arith.addi %c0_i32, %c4_i32 : i32
    %c1_i32 = arith.constant 1 : i32
    scf.for %arg5 = %c0_i32 to %0 step %c1_i32  : i32 {
      %c8_i32 = arith.constant 8 : i32
      %3 = arith.muli %arg5, %c8_i32 : i32
      %4 = tpu.assume_multiple %3, 8 : i32
      %c32_i32 = arith.constant 32 : i32
      %5 = arith.muli %arg0, %c32_i32 : i32
      %6 = arith.addi %5, %4 : i32
      %c0_i32_4 = arith.constant 0 : i32
      %7 = arith.addi %6, %c0_i32_4 : i32
      %8 = arith.index_cast %7 : i32 to index
      %9 = memref.load %arg1[%8] : memref<32xi32, #tpu.memory_space<smem>>
      %10 = arith.index_cast %9 : i32 to index
      %c0_5 = arith.constant 0 : index
      %11 = vector.load %arg2[%10, %c0_5] : memref<64x128xf32, #tpu.memory_space<vmem>>, vector<1x128xf32>
      %c0_i32_6 = arith.constant 0 : i32
      %12 = arith.addi %4, %c0_i32_6 : i32
      %13 = arith.index_cast %12 : i32 to index
      %c0_7 = arith.constant 0 : index
      %14 = vector.load %arg4[%13, %c0_7] : memref<32x128xf32, #tpu.memory_space<vmem>>, vector<1x128xf32>
      tpu.vector_store %arg4[%13, %c0_7], %11 {strides = array<i32>} : memref<32x128xf32, #tpu.memory_space<vmem>>, vector<1x128xf32>,
      %c32_i32_8 = arith.constant 32 : i32
      %15 = arith.muli %arg0, %c32_i32_8 : i32
      %16 = arith.addi %15, %4 : i32
      %c1_i32_9 = arith.constant 1 : i32
      %17 = arith.addi %16, %c1_i32_9 : i32
      %18 = arith.index_cast %17 : i32 to index
      %19 = memref.load %arg1[%18] : memref<32xi32, #tpu.memory_space<smem>>
      %20 = arith.index_cast %19 : i32 to index
      %c0_10 = arith.constant 0 : index
      %21 = vector.load %arg2[%20, %c0_10] : memref<64x128xf32, #tpu.memory_space<vmem>>, vector<1x128xf32>
      %c1_i32_11 = arith.constant 1 : i32
      %22 = arith.addi %4, %c1_i32_11 : i32
      %23 = arith.index_cast %22 : i32 to index
      %c0_12 = arith.constant 0 : index
      %24 = vector.load %arg4[%23, %c0_12] : memref<32x128xf32, #tpu.memory_space<vmem>>, vector<1x128xf32>
      tpu.vector_store %arg4[%23, %c0_12], %21 {strides = array<i32>} : memref<32x128xf32, #tpu.memory_space<vmem>>, vector<1x128xf32>,
      %c32_i32_13 = arith.constant 32 : i32
      %25 = arith.muli %arg0, %c32_i32_13 : i32
      %26 = arith.addi %25, %4 : i32
      %c2_i32 = arith.constant 2 : i32
      %27 = arith.addi %26, %c2_i32 : i32
      %28 = arith.index_cast %27 : i32 to index
      %29 = memref.load %arg1[%28] : memref<32xi32, #tpu.memory_space<smem>>
      %30 = arith.index_cast %29 : i32 to index
      %c0_14 = arith.constant 0 : index
      %31 = vector.load %arg2[%30, %c0_14] : memref<64x128xf32, #tpu.memory_space<vmem>>, vector<1x128xf32>
      %c2_i32_15 = arith.constant 2 : i32
      %32 = arith.addi %4, %c2_i32_15 : i32
      %33 = arith.index_cast %32 : i32 to index
      %c0_16 = arith.constant 0 : index
      %34 = vector.load %arg4[%33, %c0_16] : memref<32x128xf32, #tpu.memory_space<vmem>>, vector<1x128xf32>
      tpu.vector_store %arg4[%33, %c0_16], %31 {strides = array<i32>} : memref<32x128xf32, #tpu.memory_space<vmem>>, vector<1x128xf32>,
      %c32_i32_17 = arith.constant 32 : i32
      %35 = arith.muli %arg0, %c32_i32_17 : i32
      %36 = arith.addi %35, %4 : i32
      %c3_i32 = arith.constant 3 : i32
      %37 = arith.addi %36, %c3_i32 : i32
      %38 = arith.index_cast %37 : i32 to index
      %39 = memref.load %arg1[%38] : memref<32xi32, #tpu.memory_space<smem>>
      %40 = arith.index_cast %39 : i32 to index
      %c0_18 = arith.constant 0 : index
      %41 = vector.load %arg2[%40, %c0_18] : memref<64x128xf32, #tpu.memory_space<vmem>>, vector<1x128xf32>
      %c3_i32_19 = arith.constant 3 : i32
      %42 = arith.addi %4, %c3_i32_19 : i32
      %43 = arith.index_cast %42 : i32 to index
      %c0_20 = arith.constant 0 : index
      %44 = vector.load %arg4[%43, %c0_20] : memref<32x128xf32, #tpu.memory_space<vmem>>, vector<1x128xf32>
      tpu.vector_store %arg4[%43, %c0_20], %41 {strides = array<i32>} : memref<32x128xf32, #tpu.memory_space<vmem>>, vector<1x128xf32>,
      %c32_i32_21 = arith.constant 32 : i32
      %45 = arith.muli %arg0, %c32_i32_21 : i32
      %46 = arith.addi %45, %4 : i32
      %c4_i32_22 = arith.constant 4 : i32
      %47 = arith.addi %46, %c4_i32_22 : i32
      %48 = arith.index_cast %47 : i32 to index
      %49 = memref.load %arg1[%48] : memref<32xi32, #tpu.memory_space<smem>>
      %50 = arith.index_cast %49 : i32 to index
      %c0_23 = arith.constant 0 : index
      %51 = vector.load %arg2[%50, %c0_23] : memref<64x128xf32, #tpu.memory_space<vmem>>, vector<1x128xf32>
      %c4_i32_24 = arith.constant 4 : i32
      %52 = arith.addi %4, %c4_i32_24 : i32
      %53 = arith.index_cast %52 : i32 to index
      %c0_25 = arith.constant 0 : index
      %54 = vector.load %arg4[%53, %c0_25] : memref<32x128xf32, #tpu.memory_space<vmem>>, vector<1x128xf32>
      tpu.vector_store %arg4[%53, %c0_25], %51 {strides = array<i32>} : memref<32x128xf32, #tpu.memory_space<vmem>>, vector<1x128xf32>,
      %c32_i32_26 = arith.constant 32 : i32
      %55 = arith.muli %arg0, %c32_i32_26 : i32
      %56 = arith.addi %55, %4 : i32
      %c5_i32 = arith.constant 5 : i32
      %57 = arith.addi %56, %c5_i32 : i32
      %58 = arith.index_cast %57 : i32 to index
      %59 = memref.load %arg1[%58] : memref<32xi32, #tpu.memory_space<smem>>
      %60 = arith.index_cast %59 : i32 to index
      %c0_27 = arith.constant 0 : index
      %61 = vector.load %arg2[%60, %c0_27] : memref<64x128xf32, #tpu.memory_space<vmem>>, vector<1x128xf32>
      %c5_i32_28 = arith.constant 5 : i32
      %62 = arith.addi %4, %c5_i32_28 : i32
      %63 = arith.index_cast %62 : i32 to index
      %c0_29 = arith.constant 0 : index
      %64 = vector.load %arg4[%63, %c0_29] : memref<32x128xf32, #tpu.memory_space<vmem>>, vector<1x128xf32>
      tpu.vector_store %arg4[%63, %c0_29], %61 {strides = array<i32>} : memref<32x128xf32, #tpu.memory_space<vmem>>, vector<1x128xf32>,
      %c32_i32_30 = arith.constant 32 : i32
      %65 = arith.muli %arg0, %c32_i32_30 : i32
      %66 = arith.addi %65, %4 : i32
      %c6_i32 = arith.constant 6 : i32
      %67 = arith.addi %66, %c6_i32 : i32
      %68 = arith.index_cast %67 : i32 to index
      %69 = memref.load %arg1[%68] : memref<32xi32, #tpu.memory_space<smem>>
      %70 = arith.index_cast %69 : i32 to index
      %c0_31 = arith.constant 0 : index
      %71 = vector.load %arg2[%70, %c0_31] : memref<64x128xf32, #tpu.memory_space<vmem>>, vector<1x128xf32>
      %c6_i32_32 = arith.constant 6 : i32
      %72 = arith.addi %4, %c6_i32_32 : i32
      %73 = arith.index_cast %72 : i32 to index
      %c0_33 = arith.constant 0 : index
      %74 = vector.load %arg4[%73, %c0_33] : memref<32x128xf32, #tpu.memory_space<vmem>>, vector<1x128xf32>
      tpu.vector_store %arg4[%73, %c0_33], %71 {strides = array<i32>} : memref<32x128xf32, #tpu.memory_space<vmem>>, vector<1x128xf32>,
      %c32_i32_34 = arith.constant 32 : i32
      %75 = arith.muli %arg0, %c32_i32_34 : i32
      %76 = arith.addi %75, %4 : i32
      %c7_i32 = arith.constant 7 : i32
      %77 = arith.addi %76, %c7_i32 : i32
      %78 = arith.index_cast %77 : i32 to index
      %79 = memref.load %arg1[%78] : memref<32xi32, #tpu.memory_space<smem>>
      %80 = arith.index_cast %79 : i32 to index
      %c0_35 = arith.constant 0 : index
      %81 = vector.load %arg2[%80, %c0_35] : memref<64x128xf32, #tpu.memory_space<vmem>>, vector<1x128xf32>
      %c7_i32_36 = arith.constant 7 : i32
      %82 = arith.addi %4, %c7_i32_36 : i32
      %83 = arith.index_cast %82 : i32 to index
      %c0_37 = arith.constant 0 : index
      %84 = vector.load %arg4[%83, %c0_37] : memref<32x128xf32, #tpu.memory_space<vmem>>, vector<1x128xf32>
      tpu.vector_store %arg4[%83, %c0_37], %81 {strides = array<i32>} : memref<32x128xf32, #tpu.memory_space<vmem>>, vector<1x128xf32>,
    }
    %c4_i32_0 = arith.constant 4 : i32
    %c0 = arith.constant 0 : index
    %c0_1 = arith.constant 0 : index
    %1 = vector.load %arg4[%c0, %c0_1] : memref<32x128xf32, #tpu.memory_space<vmem>>, vector<32x128xf32>
    %c0_2 = arith.constant 0 : index
    %c0_3 = arith.constant 0 : index
    %2 = vector.load %arg3[%c0_2, %c0_3] : memref<32x128xf32, #tpu.memory_space<vmem>>, vector<32x128xf32>
    tpu.vector_store %arg3[%c0_2, %c0_3], %1 {strides = array<i32>} : memref<32x128xf32, #tpu.memory_space<vmem>>, vector<32x128xf32>,
    return
  }
  func.func @transform_0(%arg0: i32, %arg1: memref<32xi32, #tpu.memory_space<smem>>) -> (i32, i32) {
    %c0_i32 = arith.constant 0 : i32
    %c0_i32_0 = arith.constant 0 : i32
    %c0_i32_1 = arith.constant 0 : i32
    return %c0_i32, %c0_i32_0 : i32, i32
  }
  func.func @transform_1(%arg0: i32, %arg1: memref<32xi32, #tpu.memory_space<smem>>) -> (i32, i32) {
    %c0_i32 = arith.constant 0 : i32
    %c0_i32_0 = arith.constant 0 : i32
    return %arg0, %c0_i32 : i32, i32
  }
}

</mosaic_0001>

<llo_original>
// kernel: sparse_embedding_forward.1
$region0: #{sparse_embedding_forward.1}
  #allocation0 [shape = 'u32[]', space=smem, size = 0x4, offset = 0x4, fixed_abs, tag = 'smem constant byte address 0x4 - core index']
  #allocation1 [shape = 'u32[144,128]{1,0:T(1,128)}', space=vmem, size = 0x12000, scoped, tag = 'internal scratch']
  #allocation2 [shape = 'f32[32,128]{1,0:T(8,128)}', space=vmem, size = 0x4000, scoped, tag = 'scratch operand']
  #allocation3 [shape = 's32[1]{0}', space=sflag, size = 0x4, scoped, tag = 'scoped memory for sparse_embedding_forward.1']
  #allocation4 [shape = 'u8[512]{0}', space=smem, size = 0x200, scoped, tag = 'prefetched SMEM operand 0']
  %s0 = inlined_call_operand.vmem [shape: s32[32], index: 0, kind: input, shape index: {}]
  %s1 = inlined_call_operand.hbm [shape: f32[64,128], index: 1, kind: input, shape index: {}]
  %s2 = inlined_call_operand.vmem [shape: f32[32,128], index: 2, kind: output, shape index: {}]
  %s3 = sld [smem:[#allocation0]]
  $region25: #{sparse_embedding_forward.1} parent=0
    _
  %s5 = ssub.s32 1, %s3
  %s6 = scalar_select 0, %s5, %s3
  %s7 = sshll.u32 %s0, 4
  %s8 = int_to_ptr.vmem [resolvable:$true] %s7
  %10 = dma.vmem_to_smem %s8, 16, [#allocation4], [#allocation3]
  %11 = dma.done [#allocation3], 16
  %12 = sfence
  $region1: #{sparse_embedding_forward.1} parent=0
    #allocation5 [shape = 'u8[32768]{0}', space=vmem, size = 0x8000, scoped, tag = 'input window, operand 1, single buffered']
    #allocation6 [shape = 's32[1]{0}', space=sflag, size = 0x4, scoped, tag = 'scoped memory for sparse_embedding_forward.1']
    %13 = vsyncpa [#allocation6], 0
    // Predicated region
    $region2: #{sparse_embedding_forward.1} parent=1 // pred_check
      _
    $region3: #{sparse_embedding_forward.1} parent=1 // pred_check_branch
      %15 = sbr.rel (0) target = $region5
    $region4: #{sparse_embedding_forward.1} parent=1 // pred_region
      %s17 = ssub.s32 1024, 1024
      %18 = vsyncadd [#allocation6], %s17
      %s19 = sshll.u32 [#allocation5], 4
      %s20 = int_to_ptr.vmem [resolvable:$true] %s19
      %25 = dma.hbm_to_vmem [thread:$0]  %s1, 1024, %s20, [#allocation6], 128, 128, 8
    $region5: #{sparse_embedding_forward.1} parent=1 // pred_fallthru
      _
    // Predicated region
    $region6: #{sparse_embedding_forward.1} parent=1 // pred_check
      _
    $region7: #{sparse_embedding_forward.1} parent=1 // pred_check_branch
      %27 = sbr.rel (0) target = $region9
    $region8: #{sparse_embedding_forward.1} parent=1 // pred_region
      %28 = dma.done [#allocation6], 1024
    $region9: #{sparse_embedding_forward.1} parent=1 // pred_fallthru
      _
    loop: start=0, step=1, limit=4
    $region10: #{sparse_embedding_forward.1} parent=1 // loop_pre_header
      _
    $region11: #{sparse_embedding_forward.1} parent=1 // loop_header
      %s30 = sphi 0, %s34
      %p31 = scmp.ge.s32.totalorder %s30, 4
    $region12: #{sparse_embedding_forward.1} parent=1 // loop_header_branch
      %33 = sbr.rel (%p31) target = $region16
    $region13: #{sparse_embedding_forward.1} parent=1 // loop_body
      %s35 = smul.u32 %s30, 8
      %s36 = smul.u32 0, 32
      %s37 = sadd.s32 %s36, %s35
      %s38 = sld [smem:[#allocation4 + %s37]]
      %s39 = scalar_lea.vmem [#allocation5], %s38
      %v40 = vld [vmem:[%s39] sm:$0x1]
      %s41 = scalar_lea.vmem [#allocation2], %s35
      %42 = vst [vmem:[%s41] sm:$0x1] %v40
      %s43 = sadd.s32 %s37, 1
      %s44 = sld [smem:[#allocation4 + %s43]]
      %s45 = scalar_lea.vmem [#allocation5], %s44
      %v46 = vld [vmem:[%s45] sm:$0x1]
      %s47 = sadd.s32 %s35, 1
      %s48 = scalar_lea.vmem [#allocation2], %s47
      %49 = vst [vmem:[%s48] sm:$0x1] %v46
      %s50 = sadd.s32 %s37, 2
      %s51 = sld [smem:[#allocation4 + %s50]]
      %s52 = scalar_lea.vmem [#allocation5], %s51
      %v53 = vld [vmem:[%s52] sm:$0x1]
      %s54 = sadd.s32 %s35, 2
      %s55 = scalar_lea.vmem [#allocation2], %s54
      %56 = vst [vmem:[%s55] sm:$0x1] %v53
      %s57 = sadd.s32 %s37, 3
      %s58 = sld [smem:[#allocation4 + %s57]]
      %s59 = scalar_lea.vmem [#allocation5], %s58
      %v60 = vld [vmem:[%s59] sm:$0x1]
      %s61 = sadd.s32 %s35, 3
      %s62 = scalar_lea.vmem [#allocation2], %s61
      %63 = vst [vmem:[%s62] sm:$0x1] %v60
      %s64 = sadd.s32 %s37, 4
      %s65 = sld [smem:[#allocation4 + %s64]]
      %s66 = scalar_lea.vmem [#allocation5], %s65
      %v67 = vld [vmem:[%s66] sm:$0x1]
      %s68 = sadd.s32 %s35, 4
      %s69 = scalar_lea.vmem [#allocation2], %s68
      %70 = vst [vmem:[%s69] sm:$0x1] %v67
      %s71 = sadd.s32 %s37, 5
      %s72 = sld [smem:[#allocation4 + %s71]]
      %s73 = scalar_lea.vmem [#allocation5], %s72
      %v74 = vld [vmem:[%s73] sm:$0x1]
      %s75 = sadd.s32 %s35, 5
      %s76 = scalar_lea.vmem [#allocation2], %s75
      %77 = vst [vmem:[%s76] sm:$0x1] %v74
      %s78 = sadd.s32 %s37, 6
      %s79 = sld [smem:[#allocation4 + %s78]]
      %s80 = scalar_lea.vmem [#allocation5], %s79
      %v81 = vld [vmem:[%s80] sm:$0x1]
      %s82 = sadd.s32 %s35, 6
      %s83 = scalar_lea.vmem [#allocation2], %s82
      %84 = vst [vmem:[%s83] sm:$0x1] %v81
      %s85 = sadd.s32 %s37, 7
      %s86 = sld [smem:[#allocation4 + %s85]]
      %s87 = scalar_lea.vmem [#allocation5], %s86
      %v88 = vld [vmem:[%s87] sm:$0x1]
      %s89 = sadd.s32 %s35, 7
      %s90 = scalar_lea.vmem [#allocation2], %s89
      %91 = vst [vmem:[%s90] sm:$0x1] %v88
    $region14: #{sparse_embedding_forward.1} parent=1 // loop_footer
      %s34 = sadd.s32 1, %s30
    $region15: #{sparse_embedding_forward.1} parent=1 // loop_footer_branch
      %29 = sbr.rel target = $region11
    $region16: #{sparse_embedding_forward.1} parent=1 // loop_exit
      _
    %v92 = vld [vmem:[#allocation2] sm:$0xff]
    %v93 = vld [vmem:[#allocation2 + $0x8] sm:$0xff]
    %v94 = vld [vmem:[#allocation2 + $0x10] sm:$0xff]
    %v95 = vld [vmem:[#allocation2 + $0x18] sm:$0xff]
    %96 = vst [vmem:[%s2] sm:$0xff] %v92
    %97 = vst [vmem:[%s2 + $0x8] sm:$0xff] %v93
    %98 = vst [vmem:[%s2 + $0x10] sm:$0xff] %v94
    %99 = vst [vmem:[%s2 + $0x18] sm:$0xff] %v95
    // Predicated region
    $region17: #{sparse_embedding_forward.1} parent=1 // pred_check
      _
    $region18: #{sparse_embedding_forward.1} parent=1 // pred_check_branch
      %101 = sbr.rel (0) target = $region20
    $region19: #{sparse_embedding_forward.1} parent=1 // pred_region
      _
    $region20: #{sparse_embedding_forward.1} parent=1 // pred_fallthru
      _
    // Predicated region
    $region21: #{sparse_embedding_forward.1} parent=1 // pred_check
      _
    $region22: #{sparse_embedding_forward.1} parent=1 // pred_check_branch
      %103 = sbr.rel (0) target = $region24
    $region23: #{sparse_embedding_forward.1} parent=1 // pred_region
      _
    $region24: #{sparse_embedding_forward.1} parent=1 // pred_fallthru
      _
    %104 = vsyncpa [#allocation6], 1

</llo_original>
